<compile_context>
chip_gen: v7x
topology: tpu7x:2x2x1
jax: 0.10.0
libtpu: 0.0.40
codegen_flags: <defaults>
</compile_context>

<pallas_src>
import jax
import jax.numpy as jnp
from jax.experimental import pallas as pl
from jax.experimental.pallas import tpu as pltpu


def bilstm_kernel(x_ref, wih_f_ref, b_f_ref, wih_b_ref, b_b_ref, whh_f_ref,
                  wfc_f_ref, wfc_b_ref, bfc_ref, out_ref):
    TB, _ = x_ref.shape
    H = whh_f_ref.shape[0]
    H3 = 3 * H
    Bp = out_ref.shape[0]          # batch padded to a multiple of 8 (sublanes)
    T = TB // Bp

    # Forward input projection for ALL timesteps in one MXU matmul, bias folded.
    gates_x = (jnp.dot(x_ref[...], wih_f_ref[...],
                       preferred_element_type=jnp.float32)
               + b_f_ref[...])                                   # (T*Bp, 4H)

    whh_f = whh_f_ref[...]                                       # (H, 4H)

    def activations(gates):
        # Gate order is [i, f, o, g] (reordered in init_params):
        # sigmoid over the first 3H lanes only, tanh over the last H only.
        sig = jax.nn.sigmoid(gates[:, 0:H3])
        g_g = jnp.tanh(gates[:, H3:])
        return sig[:, 0:H], sig[:, H:2 * H], sig[:, 2 * H:H3], g_g

    # ---- forward direction, fully unrolled (T static), t = 0 peeled ---------
    i_g, _, o_g, g_g = activations(gates_x[0:Bp, :])
    c = i_g * g_g                                                # f*c0 == 0
    h = o_g * jnp.tanh(c)
    for t in range(1, T):
        # Slice start t*Bp is a multiple of 8 -> whole sublane tiles.
        gates = (gates_x[t * Bp:(t + 1) * Bp, :]
                 + jnp.dot(h, whh_f, preferred_element_type=jnp.float32))
        i_g, f_g, o_g, g_g = activations(gates)
        c = f_g * c + i_g * g_g
        h = o_g * jnp.tanh(c)

    # ---- reverse direction ---------------------------------------------------
    # Only lstm_out[:, -1, H:] is consumed, i.e. exactly one reverse cell step
    # on x[:, -1] from zero state: project just that timestep (no recurrent
    # matmul, no f*c term, no W_hh_b at all).
    x_last = x_ref[(T - 1) * Bp:T * Bp, :]                       # (Bp, I)
    gates_b = (jnp.dot(x_last, wih_b_ref[...],
                       preferred_element_type=jnp.float32)
               + b_b_ref[...])
    i_b, _, o_b, g_b = activations(gates_b)
    c_b = i_b * g_b
    h_b = o_b * jnp.tanh(c_b)

    # fc(concat([h_fwd, h_bwd])) via the pre-split fc weight halves.
    out_ref[...] = (jnp.dot(h, wfc_f_ref[...], preferred_element_type=jnp.float32)
                    + jnp.dot(h_b, wfc_b_ref[...], preferred_element_type=jnp.float32)
                    + bfc_ref[...])


def bilstm_forward(x, params):
    B, T, I = x.shape
    O = params["bfc"].shape[-1]
    Bp = ((B + 7) // 8) * 8
    # Time-major, batch padded to the sublane tile: row t*Bp + b == x[b, t].
    # (At production shapes: stream x per-timestep with grid=(T,) BlockSpecs on
    #  the native (B, T, I) layout instead of materializing this relayout.)
    xt = jnp.transpose(x, (1, 0, 2))                             # (T, B, I)
    if Bp != B:
        xt = jnp.pad(xt, ((0, 0), (0, Bp - B), (0, 0)))
    x2d = xt.reshape(T * Bp, I)

    args = (x2d, params["wih_f"], params["b_f"], params["wih_b"], params["b_b"],
            params["whh_f"], params["wfc_f"], params["wfc_b"], params["bfc"])
    vmem = pl.BlockSpec(memory_space=pltpu.MemorySpace.VMEM)
    out = pl.pallas_call(
        bilstm_kernel,
        out_shape=jax.ShapeDtypeStruct((Bp, O), jnp.float32),
        in_specs=[vmem] * len(args),
        out_specs=vmem,
    )(*args)
    return out[:B]


def init_params(key, input_size, hidden_size, output_size):
    """Deterministic params in PyTorch shapes, then re-laid-out for the kernel.

    Returns (kernel_params, torch_params); torch_params keep the raw PyTorch
    layout for the pure-JAX reference.
    """
    H = hidden_size
    bound = 1.0 / float(H) ** 0.5
    ks = jax.random.split(key, 10)

    def u(k_, shape):
        return jax.random.uniform(k_, shape, jnp.float32, -bound, bound)

    torch_params = {
        "w_ih_f": u(ks[0], (4 * H, input_size)), "w_hh_f": u(ks[1], (4 * H, H)),
        "b_ih_f": u(ks[2], (4 * H,)), "b_hh_f": u(ks[3], (4 * H,)),
        "w_ih_b": u(ks[4], (4 * H, input_size)), "w_hh_b": u(ks[5], (4 * H, H)),
        "b_ih_b": u(ks[6], (4 * H,)), "b_hh_b": u(ks[7], (4 * H,)),
        "w_fc": u(ks[8], (output_size, 2 * H)), "b_fc": u(ks[9], (output_size,)),
    }

    # PyTorch gate order [i, f, g, o] -> kernel gate order [i, f, o, g]
    def reorder(w):
        return jnp.concatenate([w[0:H], w[H:2 * H], w[3 * H:4 * H], w[2 * H:3 * H]],
                               axis=0)

    wih_f = reorder(torch_params["w_ih_f"]).T                     # (I, 4H)
    wih_b = reorder(torch_params["w_ih_b"]).T                     # (I, 4H)
    b_f = reorder(torch_params["b_ih_f"] + torch_params["b_hh_f"])[None, :]
    b_b = reorder(torch_params["b_ih_b"] + torch_params["b_hh_b"])[None, :]
    whh_f = reorder(torch_params["w_hh_f"]).T                     # (H, 4H)
    # W_hh_b intentionally dropped: never contributes for fc(lstm_out[:, -1, :]).

    wfc = torch_params["w_fc"].T                                  # (2H, O)

    kernel_params = {
        "wih_f": wih_f,                                           # (I, 4H)
        "b_f": b_f,                                               # (1, 4H)
        "wih_b": wih_b,                                           # (I, 4H)
        "b_b": b_b,                                               # (1, 4H)
        "whh_f": whh_f,                                           # (H, 4H)
        "wfc_f": wfc[:H, :],                                      # (H, O)
        "wfc_b": wfc[H:, :],                                      # (H, O)
        "bfc": torch_params["b_fc"][None, :],                     # (1, O)
    }
    return kernel_params, torch_params


def bilstm_ref(x, tp):
    """Pure-JAX reference of the PyTorch BiLSTM forward (full bidirectional pass)."""
    B, T, I = x.shape
    H = tp["w_hh_f"].shape[1]

    def cell(x_t, h, c, w_ih, w_hh, b_ih, b_hh):
        g = x_t @ w_ih.T + h @ w_hh.T + b_ih + b_hh
        i = jax.nn.sigmoid(g[:, :H])
        f = jax.nn.sigmoid(g[:, H:2 * H])
        gg = jnp.tanh(g[:, 2 * H:3 * H])
        o = jax.nn.sigmoid(g[:, 3 * H:])
        c = f * c + i * gg
        return o * jnp.tanh(c), c

    h = c = jnp.zeros((B, H), jnp.float32)
    for t in range(T):
        h, c = cell(x[:, t], h, c, tp["w_ih_f"], tp["w_hh_f"],
                    tp["b_ih_f"], tp["b_hh_f"])
    h_fwd_last = h

    hb = cb = jnp.zeros((B, H), jnp.float32)
    h_bwd_at_last = None
    for t in range(T - 1, -1, -1):
        hb, cb = cell(x[:, t], hb, cb, tp["w_ih_b"], tp["w_hh_b"],
                      tp["b_ih_b"], tp["b_hh_b"])
        if t == T - 1:
            h_bwd_at_last = hb

    feat = jnp.concatenate([h_fwd_last, h_bwd_at_last], axis=-1)
    return feat @ tp["w_fc"].T + tp["b_fc"]


if __name__ == "__main__":
    B, T, I, H, O = 2, 8, 16, 32, 8   # batch, seq, input_size, hidden_size, output_size
    key = jax.random.PRNGKey(0)
    kx, kp = jax.random.split(key)
    x = jax.random.normal(kx, (B, T, I), jnp.float32)
    kernel_params, torch_params = init_params(kp, I, H, O)

    out = jax.block_until_ready(bilstm_forward(x, kernel_params))
    ref = bilstm_ref(x, torch_params)

    assert out.shape == (B, O), out.shape
    assert jnp.allclose(out, ref, atol=1e-4, rtol=1e-4), (out, ref)
    print("KERNEL_OK")
</pallas_src>

<mosaic_0001>
module attributes {stable_mosaic.version = 11 : i64} {
  func.func @bilstm_kernel(%arg0: memref<64x16xf32, #tpu.memory_space<vmem>>, %arg1: memref<16x128xf32, #tpu.memory_space<vmem>>, %arg2: memref<1x128xf32, #tpu.memory_space<vmem>>, %arg3: memref<16x128xf32, #tpu.memory_space<vmem>>, %arg4: memref<1x128xf32, #tpu.memory_space<vmem>>, %arg5: memref<32x128xf32, #tpu.memory_space<vmem>>, %arg6: memref<32x8xf32, #tpu.memory_space<vmem>>, %arg7: memref<32x8xf32, #tpu.memory_space<vmem>>, %arg8: memref<1x8xf32, #tpu.memory_space<vmem>>, %arg9: memref<8x8xf32, #tpu.memory_space<vmem>>) attributes {dimension_semantics = [], scalar_prefetch = 0 : i64, scratch_operands = 0 : i64, tpu.core_type = #tpu.core_type<tc>} {
    %c0 = arith.constant 0 : index
    %c0_0 = arith.constant 0 : index
    %0 = vector.load %arg0[%c0, %c0_0] : memref<64x16xf32, #tpu.memory_space<vmem>>, vector<64x16xf32>
    %c0_1 = arith.constant 0 : index
    %c0_2 = arith.constant 0 : index
    %1 = vector.load %arg1[%c0_1, %c0_2] : memref<16x128xf32, #tpu.memory_space<vmem>>, vector<16x128xf32>
    %cst = arith.constant dense<0.000000e+00> : vector<64x128xf32>
    %2 = tpu.matmul %0, %1, %cst {dimension_numbers = #tpu.dot_dimension_numbers<[1], [0], [0], [1], [0, 0, 1, 1], [], []>} : vector<64x16xf32>, vector<16x128xf32>, vector<64x128xf32> -> vector<64x128xf32>
    %c0_3 = arith.constant 0 : index
    %c0_4 = arith.constant 0 : index
    %3 = vector.load %arg2[%c0_3, %c0_4] : memref<1x128xf32, #tpu.memory_space<vmem>>, vector<1x128xf32>
    %4 = vector.broadcast %3 : vector<1x128xf32> to vector<64x128xf32>
    %5 = arith.addf %2, %4 : vector<64x128xf32>
    %c0_5 = arith.constant 0 : index
    %c0_6 = arith.constant 0 : index
    %6 = vector.load %arg5[%c0_5, %c0_6] : memref<32x128xf32, #tpu.memory_space<vmem>>, vector<32x128xf32>
    %7 = vector.extract_strided_slice %5 {offsets = [0, 0], sizes = [8, 128], strides = [1, 1]} : vector<64x128xf32> to vector<8x128xf32>
    %8 = vector.extract_strided_slice %7 {offsets = [0, 0], sizes = [8, 96], strides = [1, 1]} : vector<8x128xf32> to vector<8x96xf32>
    %9 = arith.negf %8 : vector<8x96xf32>
    %10 = math.exp %9 : vector<8x96xf32>
    %cst_7 = arith.constant 1.000000e+00 : f32
    %11 = vector.broadcast %cst_7 : f32 to vector<8x96xf32>
    %12 = arith.addf %11, %10 : vector<8x96xf32>
    %13 = arith.divf %11, %12 : vector<8x96xf32>
    %14 = vector.extract_strided_slice %7 {offsets = [0, 96], sizes = [8, 32], strides = [1, 1]} : vector<8x128xf32> to vector<8x32xf32>
    %15 = math.tanh %14 : vector<8x32xf32>
    %16 = vector.extract_strided_slice %13 {offsets = [0, 0], sizes = [8, 32], strides = [1, 1]} : vector<8x96xf32> to vector<8x32xf32>
    %17 = vector.extract_strided_slice %13 {offsets = [0, 64], sizes = [8, 32], strides = [1, 1]} : vector<8x96xf32> to vector<8x32xf32>
    %18 = arith.mulf %16, %15 : vector<8x32xf32>
    %19 = math.tanh %18 : vector<8x32xf32>
    %20 = arith.mulf %17, %19 : vector<8x32xf32>
    %21 = vector.extract_strided_slice %5 {offsets = [8, 0], sizes = [8, 128], strides = [1, 1]} : vector<64x128xf32> to vector<8x128xf32>
    %cst_8 = arith.constant dense<0.000000e+00> : vector<8x128xf32>
    %22 = tpu.matmul %20, %6, %cst_8 {dimension_numbers = #tpu.dot_dimension_numbers<[1], [0], [0], [1], [0, 0, 1, 1], [], []>} : vector<8x32xf32>, vector<32x128xf32>, vector<8x128xf32> -> vector<8x128xf32>
    %23 = arith.addf %21, %22 : vector<8x128xf32>
    %24 = vector.extract_strided_slice %23 {offsets = [0, 0], sizes = [8, 96], strides = [1, 1]} : vector<8x128xf32> to vector<8x96xf32>
    %25 = arith.negf %24 : vector<8x96xf32>
    %26 = math.exp %25 : vector<8x96xf32>
    %cst_9 = arith.constant 1.000000e+00 : f32
    %27 = vector.broadcast %cst_9 : f32 to vector<8x96xf32>
    %28 = arith.addf %27, %26 : vector<8x96xf32>
    %29 = arith.divf %27, %28 : vector<8x96xf32>
    %30 = vector.extract_strided_slice %23 {offsets = [0, 96], sizes = [8, 32], strides = [1, 1]} : vector<8x128xf32> to vector<8x32xf32>
    %31 = math.tanh %30 : vector<8x32xf32>
    %32 = vector.extract_strided_slice %29 {offsets = [0, 0], sizes = [8, 32], strides = [1, 1]} : vector<8x96xf32> to vector<8x32xf32>
    %33 = vector.extract_strided_slice %29 {offsets = [0, 32], sizes = [8, 32], strides = [1, 1]} : vector<8x96xf32> to vector<8x32xf32>
    %34 = vector.extract_strided_slice %29 {offsets = [0, 64], sizes = [8, 32], strides = [1, 1]} : vector<8x96xf32> to vector<8x32xf32>
    %35 = arith.mulf %33, %18 : vector<8x32xf32>
    %36 = arith.mulf %32, %31 : vector<8x32xf32>
    %37 = arith.addf %35, %36 : vector<8x32xf32>
    %38 = math.tanh %37 : vector<8x32xf32>
    %39 = arith.mulf %34, %38 : vector<8x32xf32>
    %40 = vector.extract_strided_slice %5 {offsets = [16, 0], sizes = [8, 128], strides = [1, 1]} : vector<64x128xf32> to vector<8x128xf32>
    %cst_10 = arith.constant dense<0.000000e+00> : vector<8x128xf32>
    %41 = tpu.matmul %39, %6, %cst_10 {dimension_numbers = #tpu.dot_dimension_numbers<[1], [0], [0], [1], [0, 0, 1, 1], [], []>} : vector<8x32xf32>, vector<32x128xf32>, vector<8x128xf32> -> vector<8x128xf32>
    %42 = arith.addf %40, %41 : vector<8x128xf32>
    %43 = vector.extract_strided_slice %42 {offsets = [0, 0], sizes = [8, 96], strides = [1, 1]} : vector<8x128xf32> to vector<8x96xf32>
    %44 = arith.negf %43 : vector<8x96xf32>
    %45 = math.exp %44 : vector<8x96xf32>
    %cst_11 = arith.constant 1.000000e+00 : f32
    %46 = vector.broadcast %cst_11 : f32 to vector<8x96xf32>
    %47 = arith.addf %46, %45 : vector<8x96xf32>
    %48 = arith.divf %46, %47 : vector<8x96xf32>
    %49 = vector.extract_strided_slice %42 {offsets = [0, 96], sizes = [8, 32], strides = [1, 1]} : vector<8x128xf32> to vector<8x32xf32>
    %50 = math.tanh %49 : vector<8x32xf32>
    %51 = vector.extract_strided_slice %48 {offsets = [0, 0], sizes = [8, 32], strides = [1, 1]} : vector<8x96xf32> to vector<8x32xf32>
    %52 = vector.extract_strided_slice %48 {offsets = [0, 32], sizes = [8, 32], strides = [1, 1]} : vector<8x96xf32> to vector<8x32xf32>
    %53 = vector.extract_strided_slice %48 {offsets = [0, 64], sizes = [8, 32], strides = [1, 1]} : vector<8x96xf32> to vector<8x32xf32>
    %54 = arith.mulf %52, %37 : vector<8x32xf32>
    %55 = arith.mulf %51, %50 : vector<8x32xf32>
    %56 = arith.addf %54, %55 : vector<8x32xf32>
    %57 = math.tanh %56 : vector<8x32xf32>
    %58 = arith.mulf %53, %57 : vector<8x32xf32>
    %59 = vector.extract_strided_slice %5 {offsets = [24, 0], sizes = [8, 128], strides = [1, 1]} : vector<64x128xf32> to vector<8x128xf32>
    %cst_12 = arith.constant dense<0.000000e+00> : vector<8x128xf32>
    %60 = tpu.matmul %58, %6, %cst_12 {dimension_numbers = #tpu.dot_dimension_numbers<[1], [0], [0], [1], [0, 0, 1, 1], [], []>} : vector<8x32xf32>, vector<32x128xf32>, vector<8x128xf32> -> vector<8x128xf32>
    %61 = arith.addf %59, %60 : vector<8x128xf32>
    %62 = vector.extract_strided_slice %61 {offsets = [0, 0], sizes = [8, 96], strides = [1, 1]} : vector<8x128xf32> to vector<8x96xf32>
    %63 = arith.negf %62 : vector<8x96xf32>
    %64 = math.exp %63 : vector<8x96xf32>
    %cst_13 = arith.constant 1.000000e+00 : f32
    %65 = vector.broadcast %cst_13 : f32 to vector<8x96xf32>
    %66 = arith.addf %65, %64 : vector<8x96xf32>
    %67 = arith.divf %65, %66 : vector<8x96xf32>
    %68 = vector.extract_strided_slice %61 {offsets = [0, 96], sizes = [8, 32], strides = [1, 1]} : vector<8x128xf32> to vector<8x32xf32>
    %69 = math.tanh %68 : vector<8x32xf32>
    %70 = vector.extract_strided_slice %67 {offsets = [0, 0], sizes = [8, 32], strides = [1, 1]} : vector<8x96xf32> to vector<8x32xf32>
    %71 = vector.extract_strided_slice %67 {offsets = [0, 32], sizes = [8, 32], strides = [1, 1]} : vector<8x96xf32> to vector<8x32xf32>
    %72 = vector.extract_strided_slice %67 {offsets = [0, 64], sizes = [8, 32], strides = [1, 1]} : vector<8x96xf32> to vector<8x32xf32>
    %73 = arith.mulf %71, %56 : vector<8x32xf32>
    %74 = arith.mulf %70, %69 : vector<8x32xf32>
    %75 = arith.addf %73, %74 : vector<8x32xf32>
    %76 = math.tanh %75 : vector<8x32xf32>
    %77 = arith.mulf %72, %76 : vector<8x32xf32>
    %78 = vector.extract_strided_slice %5 {offsets = [32, 0], sizes = [8, 128], strides = [1, 1]} : vector<64x128xf32> to vector<8x128xf32>
    %cst_14 = arith.constant dense<0.000000e+00> : vector<8x128xf32>
    %79 = tpu.matmul %77, %6, %cst_14 {dimension_numbers = #tpu.dot_dimension_numbers<[1], [0], [0], [1], [0, 0, 1, 1], [], []>} : vector<8x32xf32>, vector<32x128xf32>, vector<8x128xf32> -> vector<8x128xf32>
    %80 = arith.addf %78, %79 : vector<8x128xf32>
    %81 = vector.extract_strided_slice %80 {offsets = [0, 0], sizes = [8, 96], strides = [1, 1]} : vector<8x128xf32> to vector<8x96xf32>
    %82 = arith.negf %81 : vector<8x96xf32>
    %83 = math.exp %82 : vector<8x96xf32>
    %cst_15 = arith.constant 1.000000e+00 : f32
    %84 = vector.broadcast %cst_15 : f32 to vector<8x96xf32>
    %85 = arith.addf %84, %83 : vector<8x96xf32>
    %86 = arith.divf %84, %85 : vector<8x96xf32>
    %87 = vector.extract_strided_slice %80 {offsets = [0, 96], sizes = [8, 32], strides = [1, 1]} : vector<8x128xf32> to vector<8x32xf32>
    %88 = math.tanh %87 : vector<8x32xf32>
    %89 = vector.extract_strided_slice %86 {offsets = [0, 0], sizes = [8, 32], strides = [1, 1]} : vector<8x96xf32> to vector<8x32xf32>
    %90 = vector.extract_strided_slice %86 {offsets = [0, 32], sizes = [8, 32], strides = [1, 1]} : vector<8x96xf32> to vector<8x32xf32>
    %91 = vector.extract_strided_slice %86 {offsets = [0, 64], sizes = [8, 32], strides = [1, 1]} : vector<8x96xf32> to vector<8x32xf32>
    %92 = arith.mulf %90, %75 : vector<8x32xf32>
    %93 = arith.mulf %89, %88 : vector<8x32xf32>
    %94 = arith.addf %92, %93 : vector<8x32xf32>
    %95 = math.tanh %94 : vector<8x32xf32>
    %96 = arith.mulf %91, %95 : vector<8x32xf32>
    %97 = vector.extract_strided_slice %5 {offsets = [40, 0], sizes = [8, 128], strides = [1, 1]} : vector<64x128xf32> to vector<8x128xf32>
    %cst_16 = arith.constant dense<0.000000e+00> : vector<8x128xf32>
    %98 = tpu.matmul %96, %6, %cst_16 {dimension_numbers = #tpu.dot_dimension_numbers<[1], [0], [0], [1], [0, 0, 1, 1], [], []>} : vector<8x32xf32>, vector<32x128xf32>, vector<8x128xf32> -> vector<8x128xf32>
    %99 = arith.addf %97, %98 : vector<8x128xf32>
    %100 = vector.extract_strided_slice %99 {offsets = [0, 0], sizes = [8, 96], strides = [1, 1]} : vector<8x128xf32> to vector<8x96xf32>
    %101 = arith.negf %100 : vector<8x96xf32>
    %102 = math.exp %101 : vector<8x96xf32>
    %cst_17 = arith.constant 1.000000e+00 : f32
    %103 = vector.broadcast %cst_17 : f32 to vector<8x96xf32>
    %104 = arith.addf %103, %102 : vector<8x96xf32>
    %105 = arith.divf %103, %104 : vector<8x96xf32>
    %106 = vector.extract_strided_slice %99 {offsets = [0, 96], sizes = [8, 32], strides = [1, 1]} : vector<8x128xf32> to vector<8x32xf32>
    %107 = math.tanh %106 : vector<8x32xf32>
    %108 = vector.extract_strided_slice %105 {offsets = [0, 0], sizes = [8, 32], strides = [1, 1]} : vector<8x96xf32> to vector<8x32xf32>
    %109 = vector.extract_strided_slice %105 {offsets = [0, 32], sizes = [8, 32], strides = [1, 1]} : vector<8x96xf32> to vector<8x32xf32>
    %110 = vector.extract_strided_slice %105 {offsets = [0, 64], sizes = [8, 32], strides = [1, 1]} : vector<8x96xf32> to vector<8x32xf32>
    %111 = arith.mulf %109, %94 : vector<8x32xf32>
    %112 = arith.mulf %108, %107 : vector<8x32xf32>
    %113 = arith.addf %111, %112 : vector<8x32xf32>
    %114 = math.tanh %113 : vector<8x32xf32>
    %115 = arith.mulf %110, %114 : vector<8x32xf32>
    %116 = vector.extract_strided_slice %5 {offsets = [48, 0], sizes = [8, 128], strides = [1, 1]} : vector<64x128xf32> to vector<8x128xf32>
    %cst_18 = arith.constant dense<0.000000e+00> : vector<8x128xf32>
    %117 = tpu.matmul %115, %6, %cst_18 {dimension_numbers = #tpu.dot_dimension_numbers<[1], [0], [0], [1], [0, 0, 1, 1], [], []>} : vector<8x32xf32>, vector<32x128xf32>, vector<8x128xf32> -> vector<8x128xf32>
    %118 = arith.addf %116, %117 : vector<8x128xf32>
    %119 = vector.extract_strided_slice %118 {offsets = [0, 0], sizes = [8, 96], strides = [1, 1]} : vector<8x128xf32> to vector<8x96xf32>
    %120 = arith.negf %119 : vector<8x96xf32>
    %121 = math.exp %120 : vector<8x96xf32>
    %cst_19 = arith.constant 1.000000e+00 : f32
    %122 = vector.broadcast %cst_19 : f32 to vector<8x96xf32>
    %123 = arith.addf %122, %121 : vector<8x96xf32>
    %124 = arith.divf %122, %123 : vector<8x96xf32>
    %125 = vector.extract_strided_slice %118 {offsets = [0, 96], sizes = [8, 32], strides = [1, 1]} : vector<8x128xf32> to vector<8x32xf32>
    %126 = math.tanh %125 : vector<8x32xf32>
    %127 = vector.extract_strided_slice %124 {offsets = [0, 0], sizes = [8, 32], strides = [1, 1]} : vector<8x96xf32> to vector<8x32xf32>
    %128 = vector.extract_strided_slice %124 {offsets = [0, 32], sizes = [8, 32], strides = [1, 1]} : vector<8x96xf32> to vector<8x32xf32>
    %129 = vector.extract_strided_slice %124 {offsets = [0, 64], sizes = [8, 32], strides = [1, 1]} : vector<8x96xf32> to vector<8x32xf32>
    %130 = arith.mulf %128, %113 : vector<8x32xf32>
    %131 = arith.mulf %127, %126 : vector<8x32xf32>
    %132 = arith.addf %130, %131 : vector<8x32xf32>
    %133 = math.tanh %132 : vector<8x32xf32>
    %134 = arith.mulf %129, %133 : vector<8x32xf32>
    %135 = vector.extract_strided_slice %5 {offsets = [56, 0], sizes = [8, 128], strides = [1, 1]} : vector<64x128xf32> to vector<8x128xf32>
    %cst_20 = arith.constant dense<0.000000e+00> : vector<8x128xf32>
    %136 = tpu.matmul %134, %6, %cst_20 {dimension_numbers = #tpu.dot_dimension_numbers<[1], [0], [0], [1], [0, 0, 1, 1], [], []>} : vector<8x32xf32>, vector<32x128xf32>, vector<8x128xf32> -> vector<8x128xf32>
    %137 = arith.addf %135, %136 : vector<8x128xf32>
    %138 = vector.extract_strided_slice %137 {offsets = [0, 0], sizes = [8, 96], strides = [1, 1]} : vector<8x128xf32> to vector<8x96xf32>
    %139 = arith.negf %138 : vector<8x96xf32>
    %140 = math.exp %139 : vector<8x96xf32>
    %cst_21 = arith.constant 1.000000e+00 : f32
    %141 = vector.broadcast %cst_21 : f32 to vector<8x96xf32>
    %142 = arith.addf %141, %140 : vector<8x96xf32>
    %143 = arith.divf %141, %142 : vector<8x96xf32>
    %144 = vector.extract_strided_slice %137 {offsets = [0, 96], sizes = [8, 32], strides = [1, 1]} : vector<8x128xf32> to vector<8x32xf32>
    %145 = math.tanh %144 : vector<8x32xf32>
    %146 = vector.extract_strided_slice %143 {offsets = [0, 0], sizes = [8, 32], strides = [1, 1]} : vector<8x96xf32> to vector<8x32xf32>
    %147 = vector.extract_strided_slice %143 {offsets = [0, 32], sizes = [8, 32], strides = [1, 1]} : vector<8x96xf32> to vector<8x32xf32>
    %148 = vector.extract_strided_slice %143 {offsets = [0, 64], sizes = [8, 32], strides = [1, 1]} : vector<8x96xf32> to vector<8x32xf32>
    %149 = arith.mulf %147, %132 : vector<8x32xf32>
    %150 = arith.mulf %146, %145 : vector<8x32xf32>
    %151 = arith.addf %149, %150 : vector<8x32xf32>
    %152 = math.tanh %151 : vector<8x32xf32>
    %153 = arith.mulf %148, %152 : vector<8x32xf32>
    %c56 = arith.constant 56 : index
    %c0_22 = arith.constant 0 : index
    %154 = vector.load %arg0[%c56, %c0_22] : memref<64x16xf32, #tpu.memory_space<vmem>>, vector<8x16xf32>
    %c0_23 = arith.constant 0 : index
    %c0_24 = arith.constant 0 : index
    %155 = vector.load %arg3[%c0_23, %c0_24] : memref<16x128xf32, #tpu.memory_space<vmem>>, vector<16x128xf32>
    %cst_25 = arith.constant dense<0.000000e+00> : vector<8x128xf32>
    %156 = tpu.matmul %154, %155, %cst_25 {dimension_numbers = #tpu.dot_dimension_numbers<[1], [0], [0], [1], [0, 0, 1, 1], [], []>} : vector<8x16xf32>, vector<16x128xf32>, vector<8x128xf32> -> vector<8x128xf32>
    %c0_26 = arith.constant 0 : index
    %c0_27 = arith.constant 0 : index
    %157 = vector.load %arg4[%c0_26, %c0_27] : memref<1x128xf32, #tpu.memory_space<vmem>>, vector<1x128xf32>
    %158 = vector.broadcast %157 : vector<1x128xf32> to vector<8x128xf32>
    %159 = arith.addf %156, %158 : vector<8x128xf32>
    %160 = vector.extract_strided_slice %159 {offsets = [0, 0], sizes = [8, 96], strides = [1, 1]} : vector<8x128xf32> to vector<8x96xf32>
    %161 = arith.negf %160 : vector<8x96xf32>
    %162 = math.exp %161 : vector<8x96xf32>
    %cst_28 = arith.constant 1.000000e+00 : f32
    %163 = vector.broadcast %cst_28 : f32 to vector<8x96xf32>
    %164 = arith.addf %163, %162 : vector<8x96xf32>
    %165 = arith.divf %163, %164 : vector<8x96xf32>
    %166 = vector.extract_strided_slice %159 {offsets = [0, 96], sizes = [8, 32], strides = [1, 1]} : vector<8x128xf32> to vector<8x32xf32>
    %167 = math.tanh %166 : vector<8x32xf32>
    %168 = vector.extract_strided_slice %165 {offsets = [0, 0], sizes = [8, 32], strides = [1, 1]} : vector<8x96xf32> to vector<8x32xf32>
    %169 = vector.extract_strided_slice %165 {offsets = [0, 64], sizes = [8, 32], strides = [1, 1]} : vector<8x96xf32> to vector<8x32xf32>
    %170 = arith.mulf %168, %167 : vector<8x32xf32>
    %171 = math.tanh %170 : vector<8x32xf32>
    %172 = arith.mulf %169, %171 : vector<8x32xf32>
    %c0_29 = arith.constant 0 : index
    %c0_30 = arith.constant 0 : index
    %173 = vector.load %arg6[%c0_29, %c0_30] : memref<32x8xf32, #tpu.memory_space<vmem>>, vector<32x8xf32>
    %cst_31 = arith.constant dense<0.000000e+00> : vector<8x8xf32>
    %174 = tpu.matmul %153, %173, %cst_31 {dimension_numbers = #tpu.dot_dimension_numbers<[1], [0], [0], [1], [0, 0, 1, 1], [], []>} : vector<8x32xf32>, vector<32x8xf32>, vector<8x8xf32> -> vector<8x8xf32>
    %c0_32 = arith.constant 0 : index
    %c0_33 = arith.constant 0 : index
    %175 = vector.load %arg7[%c0_32, %c0_33] : memref<32x8xf32, #tpu.memory_space<vmem>>, vector<32x8xf32>
    %cst_34 = arith.constant dense<0.000000e+00> : vector<8x8xf32>
    %176 = tpu.matmul %172, %175, %cst_34 {dimension_numbers = #tpu.dot_dimension_numbers<[1], [0], [0], [1], [0, 0, 1, 1], [], []>} : vector<8x32xf32>, vector<32x8xf32>, vector<8x8xf32> -> vector<8x8xf32>
    %177 = arith.addf %174, %176 : vector<8x8xf32>
    %c0_35 = arith.constant 0 : index
    %c0_36 = arith.constant 0 : index
    %178 = vector.load %arg8[%c0_35, %c0_36] : memref<1x8xf32, #tpu.memory_space<vmem>>, vector<1x8xf32>
    %179 = vector.broadcast %178 : vector<1x8xf32> to vector<8x8xf32>
    %180 = arith.addf %177, %179 : vector<8x8xf32>
    %c0_37 = arith.constant 0 : index
    %c0_38 = arith.constant 0 : index
    %181 = vector.load %arg9[%c0_37, %c0_38] : memref<8x8xf32, #tpu.memory_space<vmem>>, vector<8x8xf32>
    tpu.vector_store %arg9[%c0_37, %c0_38], %180 {strides = array<i32>} : memref<8x8xf32, #tpu.memory_space<vmem>>, vector<8x8xf32>,
    return
  }
}

</mosaic_0001>

<llo_original>
// kernel: tpu_custom_call.1
$region0: #{tpu_custom_call.1}
  #allocation0 [shape = 'u32[]', space=smem, size = 0x4, offset = 0x4, fixed_abs, tag = 'smem constant byte address 0x4 - core index']
  #allocation1 [shape = 'u32[144,128]{1,0:T(1,128)}', space=vmem, size = 0x12000, scoped, tag = 'internal scratch']
  %s0 = inlined_call_operand.vmem [shape: f32[64,16], index: 0, kind: input, shape index: {}]
  %s1 = inlined_call_operand.vmem [shape: f32[16,128], index: 1, kind: input, shape index: {}]
  %s2 = inlined_call_operand.vmem [shape: f32[1,128], index: 2, kind: input, shape index: {}]
  %s3 = inlined_call_operand.vmem [shape: f32[16,128], index: 3, kind: input, shape index: {}]
  %s4 = inlined_call_operand.vmem [shape: f32[1,128], index: 4, kind: input, shape index: {}]
  %s5 = inlined_call_operand.vmem [shape: f32[32,128], index: 5, kind: input, shape index: {}]
  %s6 = inlined_call_operand.vmem [shape: f32[32,8], index: 6, kind: input, shape index: {}]
  %s7 = inlined_call_operand.vmem [shape: f32[32,8], index: 7, kind: input, shape index: {}]
  %s8 = inlined_call_operand.vmem [shape: f32[1,8], index: 8, kind: input, shape index: {}]
  %s9 = inlined_call_operand.hbm [shape: f32[8,8], index: 9, kind: output, shape index: {}]
  %s10 = sld [smem:[#allocation0]]
  $region46: #{tpu_custom_call.1} parent=0
    _
  %s12 = ssub.s32 1, %s10
  %s13 = scalar_select 0, %s12, %s10
  $region1: #{tpu_custom_call.1} parent=0
    #allocation2 [shape = 'u8[4096]{0}', space=vmem, size = 0x1000, scoped, tag = 'output window, operand 0, single buffered']
    #allocation3 [shape = 's32[1]{0}', space=sflag, size = 0x4, scoped, tag = 'scoped memory for tpu_custom_call.1']
    %14 = vsyncpa [#allocation3], 0
    // Predicated region
    $region2: #{tpu_custom_call.1} parent=1 // pred_check
      _
    $region3: #{tpu_custom_call.1} parent=1 // pred_check_branch
      %16 = sbr.rel (0) target = $region5
    $region4: #{tpu_custom_call.1} parent=1 // pred_region
      _
    $region5: #{tpu_custom_call.1} parent=1 // pred_fallthru
      _
    // Predicated region
    $region6: #{tpu_custom_call.1} parent=1 // pred_check
      _
    $region7: #{tpu_custom_call.1} parent=1 // pred_check_branch
      %18 = sbr.rel (0) target = $region9
    $region8: #{tpu_custom_call.1} parent=1 // pred_region
      _
    $region9: #{tpu_custom_call.1} parent=1 // pred_fallthru
      _
    // Predicated region
    $region10: #{tpu_custom_call.1} parent=1 // pred_check
      _
    $region11: #{tpu_custom_call.1} parent=1 // pred_check_branch
      %20 = sbr.rel (0) target = $region13
    $region12: #{tpu_custom_call.1} parent=1 // pred_region
      _
    $region13: #{tpu_custom_call.1} parent=1 // pred_fallthru
      _
    // Predicated region
    $region14: #{tpu_custom_call.1} parent=1 // pred_check
      _
    $region15: #{tpu_custom_call.1} parent=1 // pred_check_branch
      %22 = sbr.rel (0) target = $region17
    $region16: #{tpu_custom_call.1} parent=1 // pred_region
      _
    $region17: #{tpu_custom_call.1} parent=1 // pred_fallthru
      _
    // Predicated region
    $region18: #{tpu_custom_call.1} parent=1 // pred_check
      _
    $region19: #{tpu_custom_call.1} parent=1 // pred_check_branch
      %24 = sbr.rel (0) target = $region21
    $region20: #{tpu_custom_call.1} parent=1 // pred_region
      _
    $region21: #{tpu_custom_call.1} parent=1 // pred_fallthru
      _
    // Predicated region
    $region22: #{tpu_custom_call.1} parent=1 // pred_check
      _
    $region23: #{tpu_custom_call.1} parent=1 // pred_check_branch
      %26 = sbr.rel (0) target = $region25
    $region24: #{tpu_custom_call.1} parent=1 // pred_region
      _
    $region25: #{tpu_custom_call.1} parent=1 // pred_fallthru
      _
    // Predicated region
    $region26: #{tpu_custom_call.1} parent=1 // pred_check
      _
    $region27: #{tpu_custom_call.1} parent=1 // pred_check_branch
      %28 = sbr.rel (0) target = $region29
    $region28: #{tpu_custom_call.1} parent=1 // pred_region
      _
    $region29: #{tpu_custom_call.1} parent=1 // pred_fallthru
      _
    // Predicated region
    $region30: #{tpu_custom_call.1} parent=1 // pred_check
      _
    $region31: #{tpu_custom_call.1} parent=1 // pred_check_branch
      %30 = sbr.rel (0) target = $region33
    $region32: #{tpu_custom_call.1} parent=1 // pred_region
      _
    $region33: #{tpu_custom_call.1} parent=1 // pred_fallthru
      _
    // Predicated region
    $region34: #{tpu_custom_call.1} parent=1 // pred_check
      _
    $region35: #{tpu_custom_call.1} parent=1 // pred_check_branch
      %32 = sbr.rel (0) target = $region37
    $region36: #{tpu_custom_call.1} parent=1 // pred_region
      _
    $region37: #{tpu_custom_call.1} parent=1 // pred_fallthru
      _
    %v33 = vld [vmem:[%s0] sm:$0xff]
    %v34 = vld [vmem:[%s0 + $0x8] sm:$0xff]
    %v35 = vld [vmem:[%s0 + $0x10] sm:$0xff]
    %v36 = vld [vmem:[%s0 + $0x18] sm:$0xff]
    %v37 = vld [vmem:[%s0 + $0x20] sm:$0xff]
    %v38 = vld [vmem:[%s0 + $0x28] sm:$0xff]
    %v39 = vld [vmem:[%s0 + $0x30] sm:$0xff]
    %v40 = vld [vmem:[%s0 + $0x38] sm:$0xff]
    %v41 = vld [vmem:[%s1] sm:$0xff]
    %v42 = vld [vmem:[%s1 + $0x8] sm:$0xff]
    %v43 = vld [vmem:[%s2] sm:$0x1]
    %v45 = vlaneseq
    %v46 = vshrl.u32 %v45, 7
    %v47 = vsub.s32 0, %v46
    %v48 = vrot.slane %v43, %v47
    %vm50 = vcmask 130048
    %v52 = vsel %vm50, %v33, 0
    %v55 = vsel %vm50, %v34, 0
    %v58 = vsel %vm50, %v35, 0
    %v61 = vsel %vm50, %v36, 0
    %v64 = vsel %vm50, %v37, 0
    %v67 = vsel %vm50, %v38, 0
    %v70 = vsel %vm50, %v39, 0
    %v73 = vsel %vm50, %v40, 0
    %75 = vmatprep.subr.mxu0 0.0
    %76 = vmatpush1.msra.mxu0 %v41
    %77 = vmatprep.subr.mxu0 0.0
    %78 = vmatpush1.msra.mxu0 %v42
    %79 = vmatprep.subr.mxu0 0.0
    %80 = vmatpush1.msra.mxu0 0.0
    %81 = vmatprep.subr.mxu0 0.0
    %82 = vmatpush1.msra.mxu0 0.0
    %83 = vmatprep.subr.mxu0 0.0
    %84 = vmatpush1.msra.mxu0 0.0
    %85 = vmatprep.subr.mxu0 0.0
    %86 = vmatpush1.msra.mxu0 0.0
    %87 = vmatprep.subr.mxu0 0.0
    %88 = vmatpush1.msra.mxu0 0.0
    %89 = vmatprep.subr.mxu0 0.0
    %90 = vmatpush1.msra.mxu0 0.0
    %91 = vmatprep.subr.mxu0 0.0
    %92 = vmatpush1.msra.mxu0 0.0
    %93 = vmatprep.subr.mxu0 0.0
    %94 = vmatpush1.msra.mxu0 0.0
    %95 = vmatprep.subr.mxu0 0.0
    %96 = vmatpush1.msra.mxu0 0.0
    %97 = vmatprep.subr.mxu0 0.0
    %98 = vmatpush1.msra.mxu0 0.0
    %99 = vmatprep.subr.mxu0 0.0
    %100 = vmatpush1.msra.mxu0 0.0
    %101 = vmatprep.subr.mxu0 0.0
    %102 = vmatpush1.msra.mxu0 0.0
    %103 = vmatprep.subr.mxu0 0.0
    %104 = vmatpush1.msra.mxu0 0.0
    %105 = vmatprep.subr.mxu0 0.0
    %106 = vmatpush1.msra.mxu0 0.0
    %107 = vmatprep.subr.mxu0 0.0
    %108 = vmatpush1.msra.mxu0 0.0
    %109 = vmatprep.subr.mxu0 0.0
    %110 = vmatpush1.msra.mxu0 0.0
    %111 = vmatprep.subr.mxu0 0.0
    %112 = vmatpush1.msra.mxu0 0.0
    %113 = vmatprep.subr.mxu0 0.0
    %114 = vmatpush1.msra.mxu0 0.0
    %115 = vmatprep.subr.mxu0 0.0
    %116 = vmatpush1.msra.mxu0 0.0
    %117 = vmatprep.subr.mxu0 0.0
    %118 = vmatpush1.msra.mxu0 0.0
    %119 = vmatprep.subr.mxu0 0.0
    %120 = vmatpush1.msra.mxu0 0.0
    %121 = vmatprep.subr.mxu0 0.0
    %122 = vmatpush1.msra.mxu0 0.0
    %123 = vmatprep.subr.mxu0 0.0
    %124 = vmatpush1.msra.mxu0 0.0
    %125 = vmatprep.subr.mxu0 0.0
    %126 = vmatpush1.msra.mxu0 0.0
    %127 = vmatprep.subr.mxu0 0.0
    %128 = vmatpush1.msra.mxu0 0.0
    %129 = vmatprep.subr.mxu0 0.0
    %130 = vmatpush1.msra.mxu0 0.0
    %131 = vmatprep.subr.mxu0 0.0
    %132 = vmatpush1.msra.mxu0 0.0
    %133 = vmatprep.subr.mxu0 0.0
    %134 = vmatpush1.msra.mxu0 0.0
    %135 = vmatprep.subr.mxu0 0.0
    %136 = vmatpush1.msra.mxu0 0.0
    %137 = vmatprep.subr.mxu0 0.0
    %138 = vmatpush1.msra.mxu0 0.0
    %139 = vmatprep.mubr.f32.mxu0 0.0
    %140 = vmatmul.mubr.f32.gmra.mrb[0].mxu0 %v52
    %v141 = vpop.f32.mrb[0].mxu0
    %v142 = vadd.f32 %v48, %v141
    %v143 = vpop.f32.mrb[0].mxu0
    %144 = vmatprep.mubr.f32.mxu0 0.0
    %145 = vmatmul.mubr.f32.gmra.mrb[0].mxu0 %v55
    %v146 = vpop.f32.mrb[0].mxu0
    %v147 = vadd.f32 %v48, %v146
    %v148 = vpop.f32.mrb[0].mxu0
    %149 = vmatprep.mubr.f32.mxu0 0.0
    %150 = vmatmul.mubr.f32.gmra.mrb[0].mxu0 %v58
    %v151 = vpop.f32.mrb[0].mxu0
    %v152 = vadd.f32 %v48, %v151
    %v153 = vpop.f32.mrb[0].mxu0
    %154 = vmatprep.mubr.f32.mxu0 0.0
    %155 = vmatmul.mubr.f32.gmra.mrb[0].mxu0 %v61
    %v156 = vpop.f32.mrb[0].mxu0
    %v157 = vadd.f32 %v48, %v156
    %v158 = vpop.f32.mrb[0].mxu0
    %159 = vmatprep.mubr.f32.mxu0 0.0
    %160 = vmatmul.mubr.f32.gmra.mrb[0].mxu0 %v64
    %v161 = vpop.f32.mrb[0].mxu0
    %v162 = vadd.f32 %v48, %v161
    %v163 = vpop.f32.mrb[0].mxu0
    %164 = vmatprep.mubr.f32.mxu0 0.0
    %165 = vmatmul.mubr.f32.gmra.mrb[0].mxu0 %v67
    %v166 = vpop.f32.mrb[0].mxu0
    %v167 = vadd.f32 %v48, %v166
    %v168 = vpop.f32.mrb[0].mxu0
    %169 = vmatprep.mubr.f32.mxu0 0.0
    %170 = vmatmul.mubr.f32.gmra.mrb[0].mxu0 %v70
    %v171 = vpop.f32.mrb[0].mxu0
    %v172 = vadd.f32 %v48, %v171
    %v173 = vpop.f32.mrb[0].mxu0
    %174 = vmatprep.mubr.f32.mxu0 0.0
    %175 = vmatmul.mubr.f32.gmra.mrb[0].mxu0 %v73
    %v176 = vpop.f32.mrb[0].mxu0
    %v177 = vadd.f32 %v48, %v176
    %v178 = vpop.f32.mrb[0].mxu0
    %179 = vdwg.mxu0
    %v180 = vld [vmem:[%s5] sm:$0xff]
    %v181 = vld [vmem:[%s5 + $0x8] sm:$0xff]
    %v182 = vld [vmem:[%s5 + $0x10] sm:$0xff]
    %v183 = vld [vmem:[%s5 + $0x18] sm:$0xff]
    %v184 = vxor.u32 %v142, 2147483648
    %v185 = vmul.f32 %v184, 1.442695
    %v186 = vpow.pop %v185
    %v187 = vadd.f32 %v186, 1.0
    %v188 = vrcp.pop %v187
    %v189 = vmul.f32 1.0, %v188
    %v190 = vtanh.pop %v142
    %192 = vrot.lane.b32.xlu0 %v190, 32
    %v193 = vpop.permute.xlu0 %192
    %v195 = vmul.f32 %v189, %v193
    %v196 = vtanh.pop %v195
    %198 = vrot.lane.b32.xlu0 %v196, 64
    %v199 = vpop.permute.xlu0 %198
    %v201 = vmul.f32 %v189, %v199
    %203 = vrot.lane.b32.xlu0 %v201, 64
    %v204 = vpop.permute.xlu0 %203
    %vm205 = vcmask 261120
    %v206 = vsel %vm205, %v204, 0
    %208 = vmatprep.subr.mxu0 0.0
    %209 = vmatpush1.msra.mxu0 %v180
    %210 = vmatprep.subr.mxu0 0.0
    %211 = vmatpush1.msra.mxu0 %v181
    %212 = vmatprep.subr.mxu0 0.0
    %213 = vmatpush1.msra.mxu0 %v182
    %214 = vmatprep.subr.mxu0 0.0
    %215 = vmatpush1.msra.mxu0 %v183
    %216 = vmatprep.subr.mxu0 0.0
    %217 = vmatpush1.msra.mxu0 0.0
    %218 = vmatprep.subr.mxu0 0.0
    %219 = vmatpush1.msra.mxu0 0.0
    %220 = vmatprep.subr.mxu0 0.0
    %221 = vmatpush1.msra.mxu0 0.0
    %222 = vmatprep.subr.mxu0 0.0
    %223 = vmatpush1.msra.mxu0 0.0
    %224 = vmatprep.subr.mxu0 0.0
    %225 = vmatpush1.msra.mxu0 0.0
    %226 = vmatprep.subr.mxu0 0.0
    %227 = vmatpush1.msra.mxu0 0.0
    %228 = vmatprep.subr.mxu0 0.0
    %229 = vmatpush1.msra.mxu0 0.0
    %230 = vmatprep.subr.mxu0 0.0
    %231 = vmatpush1.msra.mxu0 0.0
    %232 = vmatprep.subr.mxu0 0.0
    %233 = vmatpush1.msra.mxu0 0.0
    %234 = vmatprep.subr.mxu0 0.0
    %235 = vmatpush1.msra.mxu0 0.0
    %236 = vmatprep.subr.mxu0 0.0
    %237 = vmatpush1.msra.mxu0 0.0
    %238 = vmatprep.subr.mxu0 0.0
    %239 = vmatpush1.msra.mxu0 0.0
    %240 = vmatprep.subr.mxu0 0.0
    %241 = vmatpush1.msra.mxu0 0.0
    %242 = vmatprep.subr.mxu0 0.0
    %243 = vmatpush1.msra.mxu0 0.0
    %244 = vmatprep.subr.mxu0 0.0
    %245 = vmatpush1.msra.mxu0 0.0
    %246 = vmatprep.subr.mxu0 0.0
    %247 = vmatpush1.msra.mxu0 0.0
    %248 = vmatprep.subr.mxu0 0.0
    %249 = vmatpush1.msra.mxu0 0.0
    %250 = vmatprep.subr.mxu0 0.0
    %251 = vmatpush1.msra.mxu0 0.0
    %252 = vmatprep.subr.mxu0 0.0
    %253 = vmatpush1.msra.mxu0 0.0
    %254 = vmatprep.subr.mxu0 0.0
    %255 = vmatpush1.msra.mxu0 0.0
    %256 = vmatprep.subr.mxu0 0.0
    %257 = vmatpush1.msra.mxu0 0.0
    %258 = vmatprep.subr.mxu0 0.0
    %259 = vmatpush1.msra.mxu0 0.0
    %260 = vmatprep.subr.mxu0 0.0
    %261 = vmatpush1.msra.mxu0 0.0
    %262 = vmatprep.subr.mxu0 0.0
    %263 = vmatpush1.msra.mxu0 0.0
    %264 = vmatprep.subr.mxu0 0.0
    %265 = vmatpush1.msra.mxu0 0.0
    %266 = vmatprep.subr.mxu0 0.0
    %267 = vmatpush1.msra.mxu0 0.0
    %268 = vmatprep.subr.mxu0 0.0
    %269 = vmatpush1.msra.mxu0 0.0
    %270 = vmatprep.subr.mxu0 0.0
    %271 = vmatpush1.msra.mxu0 0.0
    %272 = vmatprep.mubr.f32.mxu0 0.0
    %273 = vmatmul.mubr.f32.gmra.mrb[0].mxu0 %v206
    %v274 = vpop.f32.mrb[0].mxu0
    %v275 = vadd.f32 0.0, %v274
    %v276 = vpop.f32.mrb[0].mxu0
    %277 = vdwg.mxu0
    %v278 = vadd.f32 %v147, %v275
    %v279 = vxor.u32 %v278, 2147483648
    %v280 = vmul.f32 %v279, 1.442695
    %v281 = vpow.pop %v280
    %v282 = vadd.f32 %v281, 1.0
    %v283 = vrcp.pop %v282
    %v284 = vmul.f32 1.0, %v283
    %v285 = vtanh.pop %v278
    %287 = vrot.lane.b32.xlu0 %v195, 32
    %v288 = vpop.permute.xlu0 %287
    %v290 = vmul.f32 %v284, %v288
    %292 = vrot.lane.b32.xlu0 %v285, 32
    %v293 = vpop.permute.xlu0 %292
    %v295 = vmul.f32 %v284, %v293
    %297 = vrot.lane.b32.xlu0 %v295, 32
    %v298 = vpop.permute.xlu0 %297
    %v300 = vadd.f32 %v290, %v298
    %v301 = vtanh.pop %v300
    %303 = vrot.lane.b32.xlu0 %v301, 32
    %v304 = vpop.permute.xlu0 %303
    %v306 = vmul.f32 %v284, %v304
    %308 = vrot.lane.b32.xlu0 %v306, 64
    %v309 = vpop.permute.xlu0 %308
    %v310 = vsel %vm205, %v309, 0
    %312 = vmatprep.subr.mxu0 0.0
    %313 = vmatpush1.msra.mxu0 %v180
    %314 = vmatprep.subr.mxu0 0.0
    %315 = vmatpush1.msra.mxu0 %v181
    %316 = vmatprep.subr.mxu0 0.0
    %317 = vmatpush1.msra.mxu0 %v182
    %318 = vmatprep.subr.mxu0 0.0
    %319 = vmatpush1.msra.mxu0 %v183
    %320 = vmatprep.subr.mxu0 0.0
    %321 = vmatpush1.msra.mxu0 0.0
    %322 = vmatprep.subr.mxu0 0.0
    %323 = vmatpush1.msra.mxu0 0.0
    %324 = vmatprep.subr.mxu0 0.0
    %325 = vmatpush1.msra.mxu0 0.0
    %326 = vmatprep.subr.mxu0 0.0
    %327 = vmatpush1.msra.mxu0 0.0
    %328 = vmatprep.subr.mxu0 0.0
    %329 = vmatpush1.msra.mxu0 0.0
    %330 = vmatprep.subr.mxu0 0.0
    %331 = vmatpush1.msra.mxu0 0.0
    %332 = vmatprep.subr.mxu0 0.0
    %333 = vmatpush1.msra.mxu0 0.0
    %334 = vmatprep.subr.mxu0 0.0
    %335 = vmatpush1.msra.mxu0 0.0
    %336 = vmatprep.subr.mxu0 0.0
    %337 = vmatpush1.msra.mxu0 0.0
    %338 = vmatprep.subr.mxu0 0.0
    %339 = vmatpush1.msra.mxu0 0.0
    %340 = vmatprep.subr.mxu0 0.0
    %341 = vmatpush1.msra.mxu0 0.0
    %342 = vmatprep.subr.mxu0 0.0
    %343 = vmatpush1.msra.mxu0 0.0
    %344 = vmatprep.subr.mxu0 0.0
    %345 = vmatpush1.msra.mxu0 0.0
    %346 = vmatprep.subr.mxu0 0.0
    %347 = vmatpush1.msra.mxu0 0.0
    %348 = vmatprep.subr.mxu0 0.0
    %349 = vmatpush1.msra.mxu0 0.0
    %350 = vmatprep.subr.mxu0 0.0
    %351 = vmatpush1.msra.mxu0 0.0
    %352 = vmatprep.subr.mxu0 0.0
    %353 = vmatpush1.msra.mxu0 0.0
    %354 = vmatprep.subr.mxu0 0.0
    %355 = vmatpush1.msra.mxu0 0.0
    %356 = vmatprep.subr.mxu0 0.0
    %357 = vmatpush1.msra.mxu0 0.0
    %358 = vmatprep.subr.mxu0 0.0
    %359 = vmatpush1.msra.mxu0 0.0
    %360 = vmatprep.subr.mxu0 0.0
    %361 = vmatpush1.msra.mxu0 0.0
    %362 = vmatprep.subr.mxu0 0.0
    %363 = vmatpush1.msra.mxu0 0.0
    %364 = vmatprep.subr.mxu0 0.0
    %365 = vmatpush1.msra.mxu0 0.0
    %366 = vmatprep.subr.mxu0 0.0
    %367 = vmatpush1.msra.mxu0 0.0
    %368 = vmatprep.subr.mxu0 0.0
    %369 = vmatpush1.msra.mxu0 0.0
    %370 = vmatprep.subr.mxu0 0.0
    %371 = vmatpush1.msra.mxu0 0.0
    %372 = vmatprep.subr.mxu0 0.0
    %373 = vmatpush1.msra.mxu0 0.0
    %374 = vmatprep.subr.mxu0 0.0
    %375 = vmatpush1.msra.mxu0 0.0
    %376 = vmatprep.mubr.f32.mxu0 0.0
    %377 = vmatmul.mubr.f32.gmra.mrb[0].mxu0 %v310
    %v378 = vpop.f32.mrb[0].mxu0
    %v379 = vadd.f32 0.0, %v378
    %v380 = vpop.f32.mrb[0].mxu0
    %381 = vdwg.mxu0
    %v382 = vadd.f32 %v152, %v379
    %v383 = vxor.u32 %v382, 2147483648
    %v384 = vmul.f32 %v383, 1.442695
    %v385 = vpow.pop %v384
    %v386 = vadd.f32 %v385, 1.0
    %v387 = vrcp.pop %v386
    %v388 = vmul.f32 1.0, %v387
    %v389 = vtanh.pop %v382
    %v390 = vmul.f32 %v388, %v300
    %392 = vrot.lane.b32.xlu0 %v389, 32
    %v393 = vpop.permute.xlu0 %392
    %v395 = vmul.f32 %v388, %v393
    %397 = vrot.lane.b32.xlu0 %v395, 32
    %v398 = vpop.permute.xlu0 %397
    %v400 = vadd.f32 %v390, %v398
    %v401 = vtanh.pop %v400
    %403 = vrot.lane.b32.xlu0 %v401, 32
    %v404 = vpop.permute.xlu0 %403
    %v406 = vmul.f32 %v388, %v404
    %408 = vrot.lane.b32.xlu0 %v406, 64
    %v409 = vpop.permute.xlu0 %408
    %v410 = vsel %vm205, %v409, 0
    %412 = vmatprep.subr.mxu0 0.0
    %413 = vmatpush1.msra.mxu0 %v180
    %414 = vmatprep.subr.mxu0 0.0
    %415 = vmatpush1.msra.mxu0 %v181
    %416 = vmatprep.subr.mxu0 0.0
    %417 = vmatpush1.msra.mxu0 %v182
    %418 = vmatprep.subr.mxu0 0.0
    %419 = vmatpush1.msra.mxu0 %v183
    %420 = vmatprep.subr.mxu0 0.0
    %421 = vmatpush1.msra.mxu0 0.0
    %422 = vmatprep.subr.mxu0 0.0
    %423 = vmatpush1.msra.mxu0 0.0
    %424 = vmatprep.subr.mxu0 0.0
    %425 = vmatpush1.msra.mxu0 0.0
    %426 = vmatprep.subr.mxu0 0.0
    %427 = vmatpush1.msra.mxu0 0.0
    %428 = vmatprep.subr.mxu0 0.0
    %429 = vmatpush1.msra.mxu0 0.0
    %430 = vmatprep.subr.mxu0 0.0
    %431 = vmatpush1.msra.mxu0 0.0
    %432 = vmatprep.subr.mxu0 0.0
    %433 = vmatpush1.msra.mxu0 0.0
    %434 = vmatprep.subr.mxu0 0.0
    %435 = vmatpush1.msra.mxu0 0.0
    %436 = vmatprep.subr.mxu0 0.0
    %437 = vmatpush1.msra.mxu0 0.0
    %438 = vmatprep.subr.mxu0 0.0
    %439 = vmatpush1.msra.mxu0 0.0
    %440 = vmatprep.subr.mxu0 0.0
    %441 = vmatpush1.msra.mxu0 0.0
    %442 = vmatprep.subr.mxu0 0.0
    %443 = vmatpush1.msra.mxu0 0.0
    %444 = vmatprep.subr.mxu0 0.0
    %445 = vmatpush1.msra.mxu0 0.0
    %446 = vmatprep.subr.mxu0 0.0
    %447 = vmatpush1.msra.mxu0 0.0
    %448 = vmatprep.subr.mxu0 0.0
    %449 = vmatpush1.msra.mxu0 0.0
    %450 = vmatprep.subr.mxu0 0.0
    %451 = vmatpush1.msra.mxu0 0.0
    %452 = vmatprep.subr.mxu0 0.0
    %453 = vmatpush1.msra.mxu0 0.0
    %454 = vmatprep.subr.mxu0 0.0
    %455 = vmatpush1.msra.mxu0 0.0
    %456 = vmatprep.subr.mxu0 0.0
    %457 = vmatpush1.msra.mxu0 0.0
    %458 = vmatprep.subr.mxu0 0.0
    %459 = vmatpush1.msra.mxu0 0.0
    %460 = vmatprep.subr.mxu0 0.0
    %461 = vmatpush1.msra.mxu0 0.0
    %462 = vmatprep.subr.mxu0 0.0
    %463 = vmatpush1.msra.mxu0 0.0
    %464 = vmatprep.subr.mxu0 0.0
    %465 = vmatpush1.msra.mxu0 0.0
    %466 = vmatprep.subr.mxu0 0.0
    %467 = vmatpush1.msra.mxu0 0.0
    %468 = vmatprep.subr.mxu0 0.0
    %469 = vmatpush1.msra.mxu0 0.0
    %470 = vmatprep.subr.mxu0 0.0
    %471 = vmatpush1.msra.mxu0 0.0
    %472 = vmatprep.subr.mxu0 0.0
    %473 = vmatpush1.msra.mxu0 0.0
    %474 = vmatprep.subr.mxu0 0.0
    %475 = vmatpush1.msra.mxu0 0.0
    %476 = vmatprep.mubr.f32.mxu0 0.0
    %477 = vmatmul.mubr.f32.gmra.mrb[0].mxu0 %v410
    %v478 = vpop.f32.mrb[0].mxu0
    %v479 = vadd.f32 0.0, %v478
    %v480 = vpop.f32.mrb[0].mxu0
    %481 = vdwg.mxu0
    %v482 = vadd.f32 %v157, %v479
    %v483 = vxor.u32 %v482, 2147483648
    %v484 = vmul.f32 %v483, 1.442695
    %v485 = vpow.pop %v484
    %v486 = vadd.f32 %v485, 1.0
    %v487 = vrcp.pop %v486
    %v488 = vmul.f32 1.0, %v487
    %v489 = vtanh.pop %v482
    %v490 = vmul.f32 %v488, %v400
    %492 = vrot.lane.b32.xlu0 %v489, 32
    %v493 = vpop.permute.xlu0 %492
    %v495 = vmul.f32 %v488, %v493
    %497 = vrot.lane.b32.xlu0 %v495, 32
    %v498 = vpop.permute.xlu0 %497
    %v500 = vadd.f32 %v490, %v498
    %v501 = vtanh.pop %v500
    %503 = vrot.lane.b32.xlu0 %v501, 32
    %v504 = vpop.permute.xlu0 %503
    %v506 = vmul.f32 %v488, %v504
    %508 = vrot.lane.b32.xlu0 %v506, 64
    %v509 = vpop.permute.xlu0 %508
    %v510 = vsel %vm205, %v509, 0
    %512 = vmatprep.subr.mxu0 0.0
    %513 = vmatpush1.msra.mxu0 %v180
    %514 = vmatprep.subr.mxu0 0.0
    %515 = vmatpush1.msra.mxu0 %v181
    %516 = vmatprep.subr.mxu0 0.0
    %517 = vmatpush1.msra.mxu0 %v182
    %518 = vmatprep.subr.mxu0 0.0
    %519 = vmatpush1.msra.mxu0 %v183
    %520 = vmatprep.subr.mxu0 0.0
    %521 = vmatpush1.msra.mxu0 0.0
    %522 = vmatprep.subr.mxu0 0.0
    %523 = vmatpush1.msra.mxu0 0.0
    %524 = vmatprep.subr.mxu0 0.0
    %525 = vmatpush1.msra.mxu0 0.0
    %526 = vmatprep.subr.mxu0 0.0
    %527 = vmatpush1.msra.mxu0 0.0
    %528 = vmatprep.subr.mxu0 0.0
    %529 = vmatpush1.msra.mxu0 0.0
    %530 = vmatprep.subr.mxu0 0.0
    %531 = vmatpush1.msra.mxu0 0.0
    %532 = vmatprep.subr.mxu0 0.0
    %533 = vmatpush1.msra.mxu0 0.0
    %534 = vmatprep.subr.mxu0 0.0
    %535 = vmatpush1.msra.mxu0 0.0
    %536 = vmatprep.subr.mxu0 0.0
    %537 = vmatpush1.msra.mxu0 0.0
    %538 = vmatprep.subr.mxu0 0.0
    %539 = vmatpush1.msra.mxu0 0.0
    %540 = vmatprep.subr.mxu0 0.0
    %541 = vmatpush1.msra.mxu0 0.0
    %542 = vmatprep.subr.mxu0 0.0
    %543 = vmatpush1.msra.mxu0 0.0
    %544 = vmatprep.subr.mxu0 0.0
    %545 = vmatpush1.msra.mxu0 0.0
    %546 = vmatprep.subr.mxu0 0.0
    %547 = vmatpush1.msra.mxu0 0.0
    %548 = vmatprep.subr.mxu0 0.0
    %549 = vmatpush1.msra.mxu0 0.0
    %550 = vmatprep.subr.mxu0 0.0
    %551 = vmatpush1.msra.mxu0 0.0
    %552 = vmatprep.subr.mxu0 0.0
    %553 = vmatpush1.msra.mxu0 0.0
    %554 = vmatprep.subr.mxu0 0.0
    %555 = vmatpush1.msra.mxu0 0.0
    %556 = vmatprep.subr.mxu0 0.0
    %557 = vmatpush1.msra.mxu0 0.0
    %558 = vmatprep.subr.mxu0 0.0
    %559 = vmatpush1.msra.mxu0 0.0
    %560 = vmatprep.subr.mxu0 0.0
    %561 = vmatpush1.msra.mxu0 0.0
    %562 = vmatprep.subr.mxu0 0.0
    %563 = vmatpush1.msra.mxu0 0.0
    %564 = vmatprep.subr.mxu0 0.0
    %565 = vmatpush1.msra.mxu0 0.0
    %566 = vmatprep.subr.mxu0 0.0
    %567 = vmatpush1.msra.mxu0 0.0
    %568 = vmatprep.subr.mxu0 0.0
    %569 = vmatpush1.msra.mxu0 0.0
    %570 = vmatprep.subr.mxu0 0.0
    %571 = vmatpush1.msra.mxu0 0.0
    %572 = vmatprep.subr.mxu0 0.0
    %573 = vmatpush1.msra.mxu0 0.0
    %574 = vmatprep.subr.mxu0 0.0
    %575 = vmatpush1.msra.mxu0 0.0
    %576 = vmatprep.mubr.f32.mxu0 0.0
    %577 = vmatmul.mubr.f32.gmra.mrb[0].mxu0 %v510
    %v578 = vpop.f32.mrb[0].mxu0
    %v579 = vadd.f32 0.0, %v578
    %v580 = vpop.f32.mrb[0].mxu0
    %581 = vdwg.mxu0
    %v582 = vadd.f32 %v162, %v579
    %v583 = vxor.u32 %v582, 2147483648
    %v584 = vmul.f32 %v583, 1.442695
    %v585 = vpow.pop %v584
    %v586 = vadd.f32 %v585, 1.0
    %v587 = vrcp.pop %v586
    %v588 = vmul.f32 1.0, %v587
    %v589 = vtanh.pop %v582
    %v590 = vmul.f32 %v588, %v500
    %592 = vrot.lane.b32.xlu0 %v589, 32
    %v593 = vpop.permute.xlu0 %592
    %v595 = vmul.f32 %v588, %v593
    %597 = vrot.lane.b32.xlu0 %v595, 32
    %v598 = vpop.permute.xlu0 %597
    %v600 = vadd.f32 %v590, %v598
    %v601 = vtanh.pop %v600
    %603 = vrot.lane.b32.xlu0 %v601, 32
    %v604 = vpop.permute.xlu0 %603
    %v606 = vmul.f32 %v588, %v604
    %608 = vrot.lane.b32.xlu0 %v606, 64
    %v609 = vpop.permute.xlu0 %608
    %v610 = vsel %vm205, %v609, 0
    %612 = vmatprep.subr.mxu0 0.0
    %613 = vmatpush1.msra.mxu0 %v180
    %614 = vmatprep.subr.mxu0 0.0
    %615 = vmatpush1.msra.mxu0 %v181
    %616 = vmatprep.subr.mxu0 0.0
    %617 = vmatpush1.msra.mxu0 %v182
    %618 = vmatprep.subr.mxu0 0.0
    %619 = vmatpush1.msra.mxu0 %v183
    %620 = vmatprep.subr.mxu0 0.0
    %621 = vmatpush1.msra.mxu0 0.0
    %622 = vmatprep.subr.mxu0 0.0
    %623 = vmatpush1.msra.mxu0 0.0
    %624 = vmatprep.subr.mxu0 0.0
    %625 = vmatpush1.msra.mxu0 0.0
    %626 = vmatprep.subr.mxu0 0.0
    %627 = vmatpush1.msra.mxu0 0.0
    %628 = vmatprep.subr.mxu0 0.0
    %629 = vmatpush1.msra.mxu0 0.0
    %630 = vmatprep.subr.mxu0 0.0
    %631 = vmatpush1.msra.mxu0 0.0
    %632 = vmatprep.subr.mxu0 0.0
    %633 = vmatpush1.msra.mxu0 0.0
    %634 = vmatprep.subr.mxu0 0.0
    %635 = vmatpush1.msra.mxu0 0.0
    %636 = vmatprep.subr.mxu0 0.0
    %637 = vmatpush1.msra.mxu0 0.0
    %638 = vmatprep.subr.mxu0 0.0
    %639 = vmatpush1.msra.mxu0 0.0
    %640 = vmatprep.subr.mxu0 0.0
    %641 = vmatpush1.msra.mxu0 0.0
    %642 = vmatprep.subr.mxu0 0.0
    %643 = vmatpush1.msra.mxu0 0.0
    %644 = vmatprep.subr.mxu0 0.0
    %645 = vmatpush1.msra.mxu0 0.0
    %646 = vmatprep.subr.mxu0 0.0
    %647 = vmatpush1.msra.mxu0 0.0
    %648 = vmatprep.subr.mxu0 0.0
    %649 = vmatpush1.msra.mxu0 0.0
    %650 = vmatprep.subr.mxu0 0.0
    %651 = vmatpush1.msra.mxu0 0.0
    %652 = vmatprep.subr.mxu0 0.0
    %653 = vmatpush1.msra.mxu0 0.0
    %654 = vmatprep.subr.mxu0 0.0
    %655 = vmatpush1.msra.mxu0 0.0
    %656 = vmatprep.subr.mxu0 0.0
    %657 = vmatpush1.msra.mxu0 0.0
    %658 = vmatprep.subr.mxu0 0.0
    %659 = vmatpush1.msra.mxu0 0.0
    %660 = vmatprep.subr.mxu0 0.0
    %661 = vmatpush1.msra.mxu0 0.0
    %662 = vmatprep.subr.mxu0 0.0
    %663 = vmatpush1.msra.mxu0 0.0
    %664 = vmatprep.subr.mxu0 0.0
    %665 = vmatpush1.msra.mxu0 0.0
    %666 = vmatprep.subr.mxu0 0.0
    %667 = vmatpush1.msra.mxu0 0.0
    %668 = vmatprep.subr.mxu0 0.0
    %669 = vmatpush1.msra.mxu0 0.0
    %670 = vmatprep.subr.mxu0 0.0
    %671 = vmatpush1.msra.mxu0 0.0
    %672 = vmatprep.subr.mxu0 0.0
    %673 = vmatpush1.msra.mxu0 0.0
    %674 = vmatprep.subr.mxu0 0.0
    %675 = vmatpush1.msra.mxu0 0.0
    %676 = vmatprep.mubr.f32.mxu0 0.0
    %677 = vmatmul.mubr.f32.gmra.mrb[0].mxu0 %v610
    %v678 = vpop.f32.mrb[0].mxu0
    %v679 = vadd.f32 0.0, %v678
    %v680 = vpop.f32.mrb[0].mxu0
    %681 = vdwg.mxu0
    %v682 = vadd.f32 %v167, %v679
    %v683 = vxor.u32 %v682, 2147483648
    %v684 = vmul.f32 %v683, 1.442695
    %v685 = vpow.pop %v684
    %v686 = vadd.f32 %v685, 1.0
    %v687 = vrcp.pop %v686
    %v688 = vmul.f32 1.0, %v687
    %v689 = vtanh.pop %v682
    %v690 = vmul.f32 %v688, %v600
    %692 = vrot.lane.b32.xlu0 %v689, 32
    %v693 = vpop.permute.xlu0 %692
    %v695 = vmul.f32 %v688, %v693
    %697 = vrot.lane.b32.xlu0 %v695, 32
    %v698 = vpop.permute.xlu0 %697
    %v700 = vadd.f32 %v690, %v698
    %v701 = vtanh.pop %v700
    %703 = vrot.lane.b32.xlu0 %v701, 32
    %v704 = vpop.permute.xlu0 %703
    %v706 = vmul.f32 %v688, %v704
    %708 = vrot.lane.b32.xlu0 %v706, 64
    %v709 = vpop.permute.xlu0 %708
    %v710 = vsel %vm205, %v709, 0
    %712 = vmatprep.subr.mxu0 0.0
    %713 = vmatpush1.msra.mxu0 %v180
    %714 = vmatprep.subr.mxu0 0.0
    %715 = vmatpush1.msra.mxu0 %v181
    %716 = vmatprep.subr.mxu0 0.0
    %717 = vmatpush1.msra.mxu0 %v182
    %718 = vmatprep.subr.mxu0 0.0
    %719 = vmatpush1.msra.mxu0 %v183
    %720 = vmatprep.subr.mxu0 0.0
    %721 = vmatpush1.msra.mxu0 0.0
    %722 = vmatprep.subr.mxu0 0.0
    %723 = vmatpush1.msra.mxu0 0.0
    %724 = vmatprep.subr.mxu0 0.0
    %725 = vmatpush1.msra.mxu0 0.0
    %726 = vmatprep.subr.mxu0 0.0
    %727 = vmatpush1.msra.mxu0 0.0
    %728 = vmatprep.subr.mxu0 0.0
    %729 = vmatpush1.msra.mxu0 0.0
    %730 = vmatprep.subr.mxu0 0.0
    %731 = vmatpush1.msra.mxu0 0.0
    %732 = vmatprep.subr.mxu0 0.0
    %733 = vmatpush1.msra.mxu0 0.0
    %734 = vmatprep.subr.mxu0 0.0
    %735 = vmatpush1.msra.mxu0 0.0
    %736 = vmatprep.subr.mxu0 0.0
    %737 = vmatpush1.msra.mxu0 0.0
    %738 = vmatprep.subr.mxu0 0.0
    %739 = vmatpush1.msra.mxu0 0.0
    %740 = vmatprep.subr.mxu0 0.0
    %741 = vmatpush1.msra.mxu0 0.0
    %742 = vmatprep.subr.mxu0 0.0
    %743 = vmatpush1.msra.mxu0 0.0
    %744 = vmatprep.subr.mxu0 0.0
    %745 = vmatpush1.msra.mxu0 0.0
    %746 = vmatprep.subr.mxu0 0.0
    %747 = vmatpush1.msra.mxu0 0.0
    %748 = vmatprep.subr.mxu0 0.0
    %749 = vmatpush1.msra.mxu0 0.0
    %750 = vmatprep.subr.mxu0 0.0
    %751 = vmatpush1.msra.mxu0 0.0
    %752 = vmatprep.subr.mxu0 0.0
    %753 = vmatpush1.msra.mxu0 0.0
    %754 = vmatprep.subr.mxu0 0.0
    %755 = vmatpush1.msra.mxu0 0.0
    %756 = vmatprep.subr.mxu0 0.0
    %757 = vmatpush1.msra.mxu0 0.0
    %758 = vmatprep.subr.mxu0 0.0
    %759 = vmatpush1.msra.mxu0 0.0
    %760 = vmatprep.subr.mxu0 0.0
    %761 = vmatpush1.msra.mxu0 0.0
    %762 = vmatprep.subr.mxu0 0.0
    %763 = vmatpush1.msra.mxu0 0.0
    %764 = vmatprep.subr.mxu0 0.0
    %765 = vmatpush1.msra.mxu0 0.0
    %766 = vmatprep.subr.mxu0 0.0
    %767 = vmatpush1.msra.mxu0 0.0
    %768 = vmatprep.subr.mxu0 0.0
    %769 = vmatpush1.msra.mxu0 0.0
    %770 = vmatprep.subr.mxu0 0.0
    %771 = vmatpush1.msra.mxu0 0.0
    %772 = vmatprep.subr.mxu0 0.0
    %773 = vmatpush1.msra.mxu0 0.0
    %774 = vmatprep.subr.mxu0 0.0
    %775 = vmatpush1.msra.mxu0 0.0
    %776 = vmatprep.mubr.f32.mxu0 0.0
    %777 = vmatmul.mubr.f32.gmra.mrb[0].mxu0 %v710
    %v778 = vpop.f32.mrb[0].mxu0
    %v779 = vadd.f32 0.0, %v778
    %v780 = vpop.f32.mrb[0].mxu0
    %781 = vdwg.mxu0
    %v782 = vadd.f32 %v172, %v779
    %v783 = vxor.u32 %v782, 2147483648
    %v784 = vmul.f32 %v783, 1.442695
    %v785 = vpow.pop %v784
    %v786 = vadd.f32 %v785, 1.0
    %v787 = vrcp.pop %v786
    %v788 = vmul.f32 1.0, %v787
    %v789 = vtanh.pop %v782
    %v790 = vmul.f32 %v788, %v700
    %792 = vrot.lane.b32.xlu0 %v789, 32
    %v793 = vpop.permute.xlu0 %792
    %v795 = vmul.f32 %v788, %v793
    %797 = vrot.lane.b32.xlu0 %v795, 32
    %v798 = vpop.permute.xlu0 %797
    %v800 = vadd.f32 %v790, %v798
    %v801 = vtanh.pop %v800
    %803 = vrot.lane.b32.xlu0 %v801, 32
    %v804 = vpop.permute.xlu0 %803
    %v806 = vmul.f32 %v788, %v804
    %808 = vrot.lane.b32.xlu0 %v806, 64
    %v809 = vpop.permute.xlu0 %808
    %v810 = vsel %vm205, %v809, 0
    %812 = vmatprep.subr.mxu0 0.0
    %813 = vmatpush1.msra.mxu0 %v180
    %814 = vmatprep.subr.mxu0 0.0
    %815 = vmatpush1.msra.mxu0 %v181
    %816 = vmatprep.subr.mxu0 0.0
    %817 = vmatpush1.msra.mxu0 %v182
    %818 = vmatprep.subr.mxu0 0.0
    %819 = vmatpush1.msra.mxu0 %v183
    %820 = vmatprep.subr.mxu0 0.0
    %821 = vmatpush1.msra.mxu0 0.0
    %822 = vmatprep.subr.mxu0 0.0
    %823 = vmatpush1.msra.mxu0 0.0
    %824 = vmatprep.subr.mxu0 0.0
    %825 = vmatpush1.msra.mxu0 0.0
    %826 = vmatprep.subr.mxu0 0.0
    %827 = vmatpush1.msra.mxu0 0.0
    %828 = vmatprep.subr.mxu0 0.0
    %829 = vmatpush1.msra.mxu0 0.0
    %830 = vmatprep.subr.mxu0 0.0
    %831 = vmatpush1.msra.mxu0 0.0
    %832 = vmatprep.subr.mxu0 0.0
    %833 = vmatpush1.msra.mxu0 0.0
    %834 = vmatprep.subr.mxu0 0.0
    %835 = vmatpush1.msra.mxu0 0.0
    %836 = vmatprep.subr.mxu0 0.0
    %837 = vmatpush1.msra.mxu0 0.0
    %838 = vmatprep.subr.mxu0 0.0
    %839 = vmatpush1.msra.mxu0 0.0
    %840 = vmatprep.subr.mxu0 0.0
    %841 = vmatpush1.msra.mxu0 0.0
    %842 = vmatprep.subr.mxu0 0.0
    %843 = vmatpush1.msra.mxu0 0.0
    %844 = vmatprep.subr.mxu0 0.0
    %845 = vmatpush1.msra.mxu0 0.0
    %846 = vmatprep.subr.mxu0 0.0
    %847 = vmatpush1.msra.mxu0 0.0
    %848 = vmatprep.subr.mxu0 0.0
    %849 = vmatpush1.msra.mxu0 0.0
    %850 = vmatprep.subr.mxu0 0.0
    %851 = vmatpush1.msra.mxu0 0.0
    %852 = vmatprep.subr.mxu0 0.0
    %853 = vmatpush1.msra.mxu0 0.0
    %854 = vmatprep.subr.mxu0 0.0
    %855 = vmatpush1.msra.mxu0 0.0
    %856 = vmatprep.subr.mxu0 0.0
    %857 = vmatpush1.msra.mxu0 0.0
    %858 = vmatprep.subr.mxu0 0.0
    %859 = vmatpush1.msra.mxu0 0.0
    %860 = vmatprep.subr.mxu0 0.0
    %861 = vmatpush1.msra.mxu0 0.0
    %862 = vmatprep.subr.mxu0 0.0
    %863 = vmatpush1.msra.mxu0 0.0
    %864 = vmatprep.subr.mxu0 0.0
    %865 = vmatpush1.msra.mxu0 0.0
    %866 = vmatprep.subr.mxu0 0.0
    %867 = vmatpush1.msra.mxu0 0.0
    %868 = vmatprep.subr.mxu0 0.0
    %869 = vmatpush1.msra.mxu0 0.0
    %870 = vmatprep.subr.mxu0 0.0
    %871 = vmatpush1.msra.mxu0 0.0
    %872 = vmatprep.subr.mxu0 0.0
    %873 = vmatpush1.msra.mxu0 0.0
    %874 = vmatprep.subr.mxu0 0.0
    %875 = vmatpush1.msra.mxu0 0.0
    %876 = vmatprep.mubr.f32.mxu0 0.0
    %877 = vmatmul.mubr.f32.gmra.mrb[0].mxu0 %v810
    %v878 = vpop.f32.mrb[0].mxu0
    %v879 = vadd.f32 0.0, %v878
    %v880 = vpop.f32.mrb[0].mxu0
    %881 = vdwg.mxu0
    %v882 = vadd.f32 %v177, %v879
    %v883 = vxor.u32 %v882, 2147483648
    %v884 = vmul.f32 %v883, 1.442695
    %v885 = vpow.pop %v884
    %v886 = vadd.f32 %v885, 1.0
    %v887 = vrcp.pop %v886
    %v888 = vmul.f32 1.0, %v887
    %v889 = vtanh.pop %v882
    %v890 = vmul.f32 %v888, %v800
    %892 = vrot.lane.b32.xlu0 %v889, 32
    %v893 = vpop.permute.xlu0 %892
    %v895 = vmul.f32 %v888, %v893
    %897 = vrot.lane.b32.xlu0 %v895, 32
    %v898 = vpop.permute.xlu0 %897
    %v900 = vadd.f32 %v890, %v898
    %v901 = vtanh.pop %v900
    %903 = vrot.lane.b32.xlu0 %v901, 32
    %v904 = vpop.permute.xlu0 %903
    %v906 = vmul.f32 %v888, %v904
    %v907 = vld [vmem:[%s3] sm:$0xff]
    %v908 = vld [vmem:[%s3 + $0x8] sm:$0xff]
    %v909 = vld [vmem:[%s4] sm:$0x1]
    %v911 = vlaneseq
    %v912 = vshrl.u32 %v911, 7
    %v913 = vsub.s32 0, %v912
    %v914 = vrot.slane %v909, %v913
    %916 = vmatprep.subr.mxu0 0.0
    %917 = vmatpush1.msra.mxu0 %v907
    %918 = vmatprep.subr.mxu0 0.0
    %919 = vmatpush1.msra.mxu0 %v908
    %920 = vmatprep.subr.mxu0 0.0
    %921 = vmatpush1.msra.mxu0 0.0
    %922 = vmatprep.subr.mxu0 0.0
    %923 = vmatpush1.msra.mxu0 0.0
    %924 = vmatprep.subr.mxu0 0.0
    %925 = vmatpush1.msra.mxu0 0.0
    %926 = vmatprep.subr.mxu0 0.0
    %927 = vmatpush1.msra.mxu0 0.0
    %928 = vmatprep.subr.mxu0 0.0
    %929 = vmatpush1.msra.mxu0 0.0
    %930 = vmatprep.subr.mxu0 0.0
    %931 = vmatpush1.msra.mxu0 0.0
    %932 = vmatprep.subr.mxu0 0.0
    %933 = vmatpush1.msra.mxu0 0.0
    %934 = vmatprep.subr.mxu0 0.0
    %935 = vmatpush1.msra.mxu0 0.0
    %936 = vmatprep.subr.mxu0 0.0
    %937 = vmatpush1.msra.mxu0 0.0
    %938 = vmatprep.subr.mxu0 0.0
    %939 = vmatpush1.msra.mxu0 0.0
    %940 = vmatprep.subr.mxu0 0.0
    %941 = vmatpush1.msra.mxu0 0.0
    %942 = vmatprep.subr.mxu0 0.0
    %943 = vmatpush1.msra.mxu0 0.0
    %944 = vmatprep.subr.mxu0 0.0
    %945 = vmatpush1.msra.mxu0 0.0
    %946 = vmatprep.subr.mxu0 0.0
    %947 = vmatpush1.msra.mxu0 0.0
    %948 = vmatprep.subr.mxu0 0.0
    %949 = vmatpush1.msra.mxu0 0.0
    %950 = vmatprep.subr.mxu0 0.0
    %951 = vmatpush1.msra.mxu0 0.0
    %952 = vmatprep.subr.mxu0 0.0
    %953 = vmatpush1.msra.mxu0 0.0
    %954 = vmatprep.subr.mxu0 0.0
    %955 = vmatpush1.msra.mxu0 0.0
    %956 = vmatprep.subr.mxu0 0.0
    %957 = vmatpush1.msra.mxu0 0.0
    %958 = vmatprep.subr.mxu0 0.0
    %959 = vmatpush1.msra.mxu0 0.0
    %960 = vmatprep.subr.mxu0 0.0
    %961 = vmatpush1.msra.mxu0 0.0
    %962 = vmatprep.subr.mxu0 0.0
    %963 = vmatpush1.msra.mxu0 0.0
    %964 = vmatprep.subr.mxu0 0.0
    %965 = vmatpush1.msra.mxu0 0.0
    %966 = vmatprep.subr.mxu0 0.0
    %967 = vmatpush1.msra.mxu0 0.0
    %968 = vmatprep.subr.mxu0 0.0
    %969 = vmatpush1.msra.mxu0 0.0
    %970 = vmatprep.subr.mxu0 0.0
    %971 = vmatpush1.msra.mxu0 0.0
    %972 = vmatprep.subr.mxu0 0.0
    %973 = vmatpush1.msra.mxu0 0.0
    %974 = vmatprep.subr.mxu0 0.0
    %975 = vmatpush1.msra.mxu0 0.0
    %976 = vmatprep.subr.mxu0 0.0
    %977 = vmatpush1.msra.mxu0 0.0
    %978 = vmatprep.subr.mxu0 0.0
    %979 = vmatpush1.msra.mxu0 0.0
    %980 = vmatprep.mubr.f32.mxu0 0.0
    %981 = vmatmul.mubr.f32.gmra.mrb[0].mxu0 %v73
    %v982 = vpop.f32.mrb[0].mxu0
    %v983 = vadd.f32 %v914, %v982
    %v984 = vpop.f32.mrb[0].mxu0
    %985 = vdwg.mxu0
    %v986 = vxor.u32 %v983, 2147483648
    %v987 = vmul.f32 %v986, 1.442695
    %v988 = vpow.pop %v987
    %v989 = vadd.f32 %v988, 1.0
    %v990 = vrcp.pop %v989
    %v991 = vmul.f32 1.0, %v990
    %v992 = vtanh.pop %v983
    %994 = vrot.lane.b32.xlu0 %v992, 32
    %v995 = vpop.permute.xlu0 %994
    %v997 = vmul.f32 %v991, %v995
    %v998 = vtanh.pop %v997
    %1000 = vrot.lane.b32.xlu0 %v998, 64
    %v1001 = vpop.permute.xlu0 %1000
    %v1003 = vmul.f32 %v991, %v1001
    %v1004 = vld [vmem:[%s6] sm:$0xff]
    %v1005 = vld [vmem:[%s6 + $0x8] sm:$0xff]
    %v1006 = vld [vmem:[%s6 + $0x10] sm:$0xff]
    %v1007 = vld [vmem:[%s6 + $0x18] sm:$0xff]
    %v1008 = vld [vmem:[%s7] sm:$0xff]
    %v1009 = vld [vmem:[%s7 + $0x8] sm:$0xff]
    %v1010 = vld [vmem:[%s7 + $0x10] sm:$0xff]
    %v1011 = vld [vmem:[%s7 + $0x18] sm:$0xff]
    %1013 = vrot.lane.b32.xlu0 %v1003, 64
    %v1014 = vpop.permute.xlu0 %1013
    %v1015 = vsel %vm205, %v1014, 0
    %1017 = vmatprep.subr.mxu0 0.0
    %1018 = vmatpush1.msra.mxu0 %v1008
    %1019 = vmatprep.subr.mxu0 0.0
    %1020 = vmatpush1.msra.mxu0 %v1009
    %1021 = vmatprep.subr.mxu0 0.0
    %1022 = vmatpush1.msra.mxu0 %v1010
    %1023 = vmatprep.subr.mxu0 0.0
    %1024 = vmatpush1.msra.mxu0 %v1011
    %1025 = vmatprep.subr.mxu0 0.0
    %1026 = vmatpush1.msra.mxu0 0.0
    %1027 = vmatprep.subr.mxu0 0.0
    %1028 = vmatpush1.msra.mxu0 0.0
    %1029 = vmatprep.subr.mxu0 0.0
    %1030 = vmatpush1.msra.mxu0 0.0
    %1031 = vmatprep.subr.mxu0 0.0
    %1032 = vmatpush1.msra.mxu0 0.0
    %1033 = vmatprep.subr.mxu0 0.0
    %1034 = vmatpush1.msra.mxu0 0.0
    %1035 = vmatprep.subr.mxu0 0.0
    %1036 = vmatpush1.msra.mxu0 0.0
    %1037 = vmatprep.subr.mxu0 0.0
    %1038 = vmatpush1.msra.mxu0 0.0
    %1039 = vmatprep.subr.mxu0 0.0
    %1040 = vmatpush1.msra.mxu0 0.0
    %1041 = vmatprep.subr.mxu0 0.0
    %1042 = vmatpush1.msra.mxu0 0.0
    %1043 = vmatprep.subr.mxu0 0.0
    %1044 = vmatpush1.msra.mxu0 0.0
    %1045 = vmatprep.subr.mxu0 0.0
    %1046 = vmatpush1.msra.mxu0 0.0
    %1047 = vmatprep.subr.mxu0 0.0
    %1048 = vmatpush1.msra.mxu0 0.0
    %1049 = vmatprep.subr.mxu0 0.0
    %1050 = vmatpush1.msra.mxu0 0.0
    %1051 = vmatprep.subr.mxu0 0.0
    %1052 = vmatpush1.msra.mxu0 0.0
    %1053 = vmatprep.subr.mxu0 0.0
    %1054 = vmatpush1.msra.mxu0 0.0
    %1055 = vmatprep.subr.mxu0 0.0
    %1056 = vmatpush1.msra.mxu0 0.0
    %1057 = vmatprep.subr.mxu0 0.0
    %1058 = vmatpush1.msra.mxu0 0.0
    %1059 = vmatprep.subr.mxu0 0.0
    %1060 = vmatpush1.msra.mxu0 0.0
    %1061 = vmatprep.subr.mxu0 0.0
    %1062 = vmatpush1.msra.mxu0 0.0
    %1063 = vmatprep.subr.mxu0 0.0
    %1064 = vmatpush1.msra.mxu0 0.0
    %1065 = vmatprep.subr.mxu0 0.0
    %1066 = vmatpush1.msra.mxu0 0.0
    %1067 = vmatprep.subr.mxu0 0.0
    %1068 = vmatpush1.msra.mxu0 0.0
    %1069 = vmatprep.subr.mxu0 0.0
    %1070 = vmatpush1.msra.mxu0 0.0
    %1071 = vmatprep.subr.mxu0 0.0
    %1072 = vmatpush1.msra.mxu0 0.0
    %1073 = vmatprep.subr.mxu0 0.0
    %1074 = vmatpush1.msra.mxu0 0.0
    %1075 = vmatprep.subr.mxu0 0.0
    %1076 = vmatpush1.msra.mxu0 0.0
    %1077 = vmatprep.subr.mxu0 0.0
    %1078 = vmatpush1.msra.mxu0 0.0
    %1079 = vmatprep.subr.mxu0 0.0
    %1080 = vmatpush1.msra.mxu0 0.0
    %1081 = vmatprep.mubr.f32.mxu0 0.0
    %1082 = vmatmul.mubr.f32.gmra.mrb[0].mxu0 %v1015
    %v1083 = vpop.f32.mrb[0].mxu0
    %v1084 = vadd.f32 0.0, %v1083
    %v1085 = vpop.f32.mrb[0].mxu0
    %1086 = vdwg.mxu0
    %1088 = vrot.lane.b32.xlu0 %v906, 64
    %v1089 = vpop.permute.xlu0 %1088
    %v1090 = vsel %vm205, %v1089, 0
    %1092 = vmatprep.subr.mxu0 0.0
    %1093 = vmatpush1.msra.mxu0 %v1004
    %1094 = vmatprep.subr.mxu0 0.0
    %1095 = vmatpush1.msra.mxu0 %v1005
    %1096 = vmatprep.subr.mxu0 0.0
    %1097 = vmatpush1.msra.mxu0 %v1006
    %1098 = vmatprep.subr.mxu0 0.0
    %1099 = vmatpush1.msra.mxu0 %v1007
    %1100 = vmatprep.subr.mxu0 0.0
    %1101 = vmatpush1.msra.mxu0 0.0
    %1102 = vmatprep.subr.mxu0 0.0
    %1103 = vmatpush1.msra.mxu0 0.0
    %1104 = vmatprep.subr.mxu0 0.0
    %1105 = vmatpush1.msra.mxu0 0.0
    %1106 = vmatprep.subr.mxu0 0.0
    %1107 = vmatpush1.msra.mxu0 0.0
    %1108 = vmatprep.subr.mxu0 0.0
    %1109 = vmatpush1.msra.mxu0 0.0
    %1110 = vmatprep.subr.mxu0 0.0
    %1111 = vmatpush1.msra.mxu0 0.0
    %1112 = vmatprep.subr.mxu0 0.0
    %1113 = vmatpush1.msra.mxu0 0.0
    %1114 = vmatprep.subr.mxu0 0.0
    %1115 = vmatpush1.msra.mxu0 0.0
    %1116 = vmatprep.subr.mxu0 0.0
    %1117 = vmatpush1.msra.mxu0 0.0
    %1118 = vmatprep.subr.mxu0 0.0
    %1119 = vmatpush1.msra.mxu0 0.0
    %1120 = vmatprep.subr.mxu0 0.0
    %1121 = vmatpush1.msra.mxu0 0.0
    %1122 = vmatprep.subr.mxu0 0.0
    %1123 = vmatpush1.msra.mxu0 0.0
    %1124 = vmatprep.subr.mxu0 0.0
    %1125 = vmatpush1.msra.mxu0 0.0
    %1126 = vmatprep.subr.mxu0 0.0
    %1127 = vmatpush1.msra.mxu0 0.0
    %1128 = vmatprep.subr.mxu0 0.0
    %1129 = vmatpush1.msra.mxu0 0.0
    %1130 = vmatprep.subr.mxu0 0.0
    %1131 = vmatpush1.msra.mxu0 0.0
    %1132 = vmatprep.subr.mxu0 0.0
    %1133 = vmatpush1.msra.mxu0 0.0
    %1134 = vmatprep.subr.mxu0 0.0
    %1135 = vmatpush1.msra.mxu0 0.0
    %1136 = vmatprep.subr.mxu0 0.0
    %1137 = vmatpush1.msra.mxu0 0.0
    %1138 = vmatprep.subr.mxu0 0.0
    %1139 = vmatpush1.msra.mxu0 0.0
    %1140 = vmatprep.subr.mxu0 0.0
    %1141 = vmatpush1.msra.mxu0 0.0
    %1142 = vmatprep.subr.mxu0 0.0
    %1143 = vmatpush1.msra.mxu0 0.0
    %1144 = vmatprep.subr.mxu0 0.0
    %1145 = vmatpush1.msra.mxu0 0.0
    %1146 = vmatprep.subr.mxu0 0.0
    %1147 = vmatpush1.msra.mxu0 0.0
    %1148 = vmatprep.subr.mxu0 0.0
    %1149 = vmatpush1.msra.mxu0 0.0
    %1150 = vmatprep.subr.mxu0 0.0
    %1151 = vmatpush1.msra.mxu0 0.0
    %1152 = vmatprep.subr.mxu0 0.0
    %1153 = vmatpush1.msra.mxu0 0.0
    %1154 = vmatprep.subr.mxu0 0.0
    %1155 = vmatpush1.msra.mxu0 0.0
    %1156 = vmatprep.mubr.f32.mxu0 0.0
    %1157 = vmatmul.mubr.f32.gmra.mrb[0].mxu0 %v1090
    %v1158 = vpop.f32.mrb[0].mxu0
    %v1159 = vadd.f32 %v1084, %v1158
    %v1160 = vpop.f32.mrb[0].mxu0
    %1161 = vdwg.mxu0
    %v1162 = vld [vmem:[%s8] sm:$0x1]
    %v1164 = vlaneseq
    %v1165 = vshrl.u32 %v1164, 7
    %v1166 = vsub.s32 0, %v1165
    %v1167 = vrot.slane %v1162, %v1166
    %v1169 = vadd.f32 %v1159, %v1167
    %vm1170 = vcmask 64512
    %1171 = vst.msk [vmem:[#allocation2] sm:$0xff] %vm1170, %v1169
    // Predicated region
    $region38: #{tpu_custom_call.1} parent=1 // pred_check
      _
    $region39: #{tpu_custom_call.1} parent=1 // pred_check_branch
      %1173 = sbr.rel (0) target = $region41
    $region40: #{tpu_custom_call.1} parent=1 // pred_region
      %s1175 = ssub.s32 128, 128
      %1176 = vsyncadd [#allocation3], %s1175
      %s1178 = sshll.u32 [#allocation2], 4
      %s1179 = int_to_ptr.vmem [resolvable:$true] %s1178
      %1181 = dma.vmem_to_hbm [thread:$0]  %s1179, 128, %s9, [#allocation3]
    $region41: #{tpu_custom_call.1} parent=1 // pred_fallthru
      _
    // Predicated region
    $region42: #{tpu_custom_call.1} parent=1 // pred_check
      _
    $region43: #{tpu_custom_call.1} parent=1 // pred_check_branch
      %1183 = sbr.rel (0) target = $region45
    $region44: #{tpu_custom_call.1} parent=1 // pred_region
      %1184 = dma.done [#allocation3], 128
    $region45: #{tpu_custom_call.1} parent=1 // pred_fallthru
      _
    %1185 = vsyncpa [#allocation3], 1

</llo_original>
